<compile_context>
chip_gen: v7x
topology: tpu7x:2x2x1
jax: 0.10.0
libtpu: 0.0.40
codegen_flags: <defaults>
</compile_context>

<pallas_src>
import functools

import jax
import jax.numpy as jnp
from jax.experimental import pallas as pl
from jax.experimental.pallas import tpu as pltpu


def _res_tower_kernel(n_layers, x_ref, w1_ref, b1_ref, w2_ref, b2_ref, o_ref):
    """x_ref: (bm_ld, rD) lane-dense tile; weights: (L, rD, rH)/(L, rH, rD)."""
    wdt = w1_ref.dtype
    x = x_ref[...].astype(jnp.float32)                       # (bm_ld, rD)
    for l in range(n_layers):                                # statically unrolled
        # linear1 + ReLU  (MXU matmul, f32 accumulation)
        h = jnp.dot(x.astype(wdt), w1_ref[l],
                    preferred_element_type=jnp.float32) + b1_ref[l].astype(jnp.float32)
        h = jnp.maximum(h, 0.0)
        # linear2 + ReLU
        y = jnp.dot(h.astype(wdt), w2_ref[l],
                    preferred_element_type=jnp.float32) + b2_ref[l].astype(jnp.float32)
        y = jnp.maximum(y, 0.0)
        # residual add in f32, stays lane-dense
        x = y + x
    o_ref[...] = x.astype(o_ref.dtype)


def _round_up(n, m):
    return ((n + m - 1) // m) * m


def _block_diag(w, r):
    """kron(I_r, w): block-diagonal weight so matmul works in packed layout."""
    if r == 1:
        return w
    return jnp.kron(jnp.eye(r, dtype=w.dtype), w)


def res_block_tower(x, layers, *, bm_max=4096):
    """Run L stacked Res_blocks fused in one kernel.

    x:      (B, dim_stack)
    layers: list of (w1, b1, w2, b2) with w1: (D, H), b1: (H,), w2: (H, D),
            b2: (D,)  — weights pre-transposed to (in, out).
    """
    B, D = x.shape
    L = len(layers)
    H = layers[0][0].shape[1]
    w_dtype = layers[0][0].dtype

    itemsize = jnp.dtype(x.dtype).itemsize
    w_itemsize = jnp.dtype(w_dtype).itemsize

    # Lane packing factor: fold r consecutive logical rows (width D) into one
    # 128-wide lane row.  Falls back to r=1 when D does not divide 128.
    r = 128 // D if (D < 128 and 128 % D == 0) else 1
    rD, rH = r * D, r * H

    sub_x = 32 // itemsize          # sublane pack of activation dtype (f32->8, bf16->16)
    sub_w = 32 // w_itemsize
    align = sub_x * r               # batch rows per sublane-aligned lane-dense row group

    # ---- padded (true VMEM) sizes ---------------------------------------
    rD_l = _round_up(rD, 128)
    rH_l = _round_up(rH, 128)
    # resident weights/biases (x2 for pipeline buffering headroom)
    weight_bytes = 2 * L * w_itemsize * (
        _round_up(rD, sub_w) * rH_l + _round_up(rH, sub_w) * rD_l
        + sub_w * rH_l + sub_w * rD_l)
    # per lane-dense row: double-buffered x + out tiles, plus f32 intermediates
    per_ld_row = 4 * rD_l * itemsize + 4 * (rH_l + 2 * rD_l)

    # Cap the batch tile so the working set stays ~<= 24 MiB (fits v7x).
    budget = (24 << 20) - weight_bytes
    bm_ld_cap = max(sub_x,
                    (max(budget, per_ld_row * sub_x) // per_ld_row) // sub_x * sub_x)
    bm_max = max(align, min(bm_max, bm_ld_cap * r))

    # ---- batch tile / grid selection ------------------------------------
    if B <= bm_max:
        g = 1
        bm = _round_up(B, align)
    else:
        g = -(-B // bm_max)
        if g % 2:
            g += 1                   # even grid -> clean 2-way TC split on v7x
        bm = _round_up(-(-B // g), align)
    B_pad = bm * g
    bm_ld = bm // r

    x_pad = x if B_pad == B else jnp.pad(x, ((0, B_pad - B), (0, 0)))
    x_ld = x_pad.reshape(B_pad // r, rD)          # free row-major reshape

    # Packed (block-diagonal) weights and r-tiled biases, stacked over layers.
    w1s = jnp.stack([_block_diag(w1, r) for (w1, b1, w2, b2) in layers])     # (L, rD, rH)
    b1s = jnp.stack([jnp.tile(b1, r).reshape(1, rH) for (w1, b1, w2, b2) in layers])
    w2s = jnp.stack([_block_diag(w2, r) for (w1, b1, w2, b2) in layers])     # (L, rH, rD)
    b2s = jnp.stack([jnp.tile(b2, r).reshape(1, rD) for (w1, b1, w2, b2) in layers])

    # Padding-aware VMEM budget: io tiles (double-buffered) + resident weights
    # + f32 intermediates + headroom; floor 16 MiB, cap 64 MiB (v7x physical).
    io_bytes = 4 * bm_ld * rD_l * itemsize
    inter_bytes = bm_ld * (rH_l + 2 * rD_l) * 4
    vmem_limit = int(min(max(io_bytes + weight_bytes + inter_bytes + (4 << 20),
                             16 << 20), 64 << 20))

    kernel = functools.partial(_res_tower_kernel, L)

    out_ld = pl.pallas_call(
        kernel,
        out_shape=jax.ShapeDtypeStruct((B_pad // r, rD), x.dtype),
        grid_spec=pltpu.PrefetchScalarGridSpec(
            num_scalar_prefetch=0,
            grid=(g,),
            in_specs=[
                pl.BlockSpec((bm_ld, rD), lambda i: (i, 0)),      # x tile (pipelined, lane-dense)
                pl.BlockSpec((L, rD, rH), lambda i: (0, 0, 0)),   # W1 stack (resident)
                pl.BlockSpec((L, 1, rH), lambda i: (0, 0, 0)),    # b1 stack (resident)
                pl.BlockSpec((L, rH, rD), lambda i: (0, 0, 0)),   # W2 stack (resident)
                pl.BlockSpec((L, 1, rD), lambda i: (0, 0, 0)),    # b2 stack (resident)
            ],
            out_specs=pl.BlockSpec((bm_ld, rD), lambda i: (i, 0)),
        ),
        compiler_params=pltpu.CompilerParams(
            # NOTE: plain "parallel" + even grid length; pltpu.CORE_PARALLEL is
            # a possible further tweak on v7x but "parallel" is portable.
            dimension_semantics=("parallel",),
            vmem_limit_bytes=vmem_limit),
    )(x_ld, w1s, b1s, w2s, b2s)

    out = out_ld.reshape(B_pad, D)
    return out[:B] if B_pad != B else out


def res_block(x, w1, b1, w2, b2, *, bm_max=4096):
    """Single Res_block forward: relu(relu(x@w1+b1)@w2+b2) + x."""
    return res_block_tower(x, [(w1, b1, w2, b2)], bm_max=bm_max)


def res_block_ref(x, w1, b1, w2, b2):
    h = jnp.maximum(x @ w1 + b1, 0.0)
    y = jnp.maximum(h @ w2 + b2, 0.0)
    return y + x


if __name__ == "__main__":
    # Shapes consistent with the module: batch=16, dim_stack=32, hidden_unit=64
    B, D, H = 16, 32, 64
    key = jax.random.PRNGKey(0)
    (kx, kw1, kb1, kw2, kb2, kw3, kb3, kw4, kb4) = jax.random.split(key, 9)

    # Deterministic PyTorch-style init: U(-1/sqrt(fan_in), 1/sqrt(fan_in)).
    lim1 = 1.0 / jnp.sqrt(jnp.float32(D))
    lim2 = 1.0 / jnp.sqrt(jnp.float32(H))
    w1 = jax.random.uniform(kw1, (D, H), jnp.float32, -lim1, lim1)   # (in, out)
    b1 = jax.random.uniform(kb1, (H,), jnp.float32, -lim1, lim1)
    w2 = jax.random.uniform(kw2, (H, D), jnp.float32, -lim2, lim2)   # (in, out)
    b2 = jax.random.uniform(kb2, (D,), jnp.float32, -lim2, lim2)

    # Case 1: small batch -> single grid step, lane-packed (D=32 -> 4 rows/128 lanes).
    x_small = jax.random.normal(kx, (B, D), dtype=jnp.float32)
    out_small = jax.block_until_ready(res_block(x_small, w1, b1, w2, b2))
    ref_small = res_block_ref(x_small, w1, b1, w2, b2)
    assert out_small.shape == (B, D)
    assert jnp.allclose(out_small, ref_small, atol=1e-5, rtol=1e-5), \
        "mismatch vs reference (small batch)"

    # Case 2: ragged batch -> padding, still a single big lane-dense tile.
    B_big = 1029
    x_big = jax.random.normal(kx, (B_big, D), dtype=jnp.float32)
    out_big = jax.block_until_ready(res_block(x_big, w1, b1, w2, b2))
    ref_big = res_block_ref(x_big, w1, b1, w2, b2)
    assert out_big.shape == (B_big, D)
    assert jnp.allclose(out_big, ref_big, atol=1e-5, rtol=1e-5), \
        "mismatch vs reference (ragged batch)"

    # Case 3: fused 2-layer residual tower (DeepCross stack) in one kernel.
    w3 = jax.random.uniform(kw3, (D, H), jnp.float32, -lim1, lim1)
    b3 = jax.random.uniform(kb3, (H,), jnp.float32, -lim1, lim1)
    w4 = jax.random.uniform(kw4, (H, D), jnp.float32, -lim2, lim2)
    b4 = jax.random.uniform(kb4, (D,), jnp.float32, -lim2, lim2)
    out_tower = jax.block_until_ready(
        res_block_tower(x_big, [(w1, b1, w2, b2), (w3, b3, w4, b4)]))
    ref_tower = res_block_ref(res_block_ref(x_big, w1, b1, w2, b2), w3, b3, w4, b4)
    assert out_tower.shape == (B_big, D)
    assert jnp.allclose(out_tower, ref_tower, atol=1e-4, rtol=1e-5), \
        "mismatch vs reference (fused tower)"

    # Case 4: dims that don't divide 128 -> unpacked fallback path (r=1).
    D2, H2, B2 = 48, 80, 37
    kx2, kw5, kb5, kw6, kb6 = jax.random.split(jax.random.PRNGKey(0), 5)
    l1 = 1.0 / jnp.sqrt(jnp.float32(D2))
    l2 = 1.0 / jnp.sqrt(jnp.float32(H2))
    w5 = jax.random.uniform(kw5, (D2, H2), jnp.float32, -l1, l1)
    b5 = jax.random.uniform(kb5, (H2,), jnp.float32, -l1, l1)
    w6 = jax.random.uniform(kw6, (H2, D2), jnp.float32, -l2, l2)
    b6 = jax.random.uniform(kb6, (D2,), jnp.float32, -l2, l2)
    x2 = jax.random.normal(kx2, (B2, D2), dtype=jnp.float32)
    out2 = jax.block_until_ready(res_block(x2, w5, b5, w6, b6))
    ref2 = res_block_ref(x2, w5, b5, w6, b6)
    assert out2.shape == (B2, D2)
    assert jnp.allclose(out2, ref2, atol=2e-5, rtol=2e-5), \
        "mismatch vs reference (fallback dims)"

    print("KERNEL_OK")
</pallas_src>

<mosaic_0001>
module attributes {stable_mosaic.version = 11 : i64} {
  func.func @_res_tower_kernel(%arg0: i32, %arg1: memref<8x128xf32, #tpu.memory_space<vmem>>, %arg2: memref<1x128x256xf32, #tpu.memory_space<vmem>>, %arg3: memref<1x1x256xf32, #tpu.memory_space<vmem>>, %arg4: memref<1x256x128xf32, #tpu.memory_space<vmem>>, %arg5: memref<1x1x128xf32, #tpu.memory_space<vmem>>, %arg6: memref<8x128xf32, #tpu.memory_space<vmem>>) attributes {dimension_semantics = [#tpu.dimension_semantics<parallel>], iteration_bounds = array<i64: 1>, scalar_prefetch = 0 : i64, scratch_operands = 0 : i64, tpu.core_type = #tpu.core_type<tc>, window_params = [{transform_indices = @transform_0, window_bounds = array<i64: 8, 128>}, {pipeline_mode = #tpu.pipeline_mode<synchronous>, transform_indices = @transform_1, window_bounds = array<i64: 1, 128, 256>}, {pipeline_mode = #tpu.pipeline_mode<synchronous>, transform_indices = @transform_2, window_bounds = array<i64: 1, 1, 256>}, {pipeline_mode = #tpu.pipeline_mode<synchronous>, transform_indices = @transform_3, window_bounds = array<i64: 1, 256, 128>}, {pipeline_mode = #tpu.pipeline_mode<synchronous>, transform_indices = @transform_4, window_bounds = array<i64: 1, 1, 128>}, {transform_indices = @transform_5, window_bounds = array<i64: 8, 128>}]} {
    %c0 = arith.constant 0 : index
    %c0_0 = arith.constant 0 : index
    %0 = vector.load %arg1[%c0, %c0_0] : memref<8x128xf32, #tpu.memory_space<vmem>>, vector<8x128xf32>
    %c0_1 = arith.constant 0 : index
    %c0_2 = arith.constant 0 : index
    %c0_3 = arith.constant 0 : index
    %1 = vector.load %arg2[%c0_1, %c0_2, %c0_3] : memref<1x128x256xf32, #tpu.memory_space<vmem>>, vector<1x128x256xf32>
    %2 = vector.shape_cast %1 : vector<1x128x256xf32> to vector<128x256xf32>
    %cst = arith.constant dense<0.000000e+00> : vector<8x256xf32>
    %3 = tpu.matmul %0, %2, %cst {dimension_numbers = #tpu.dot_dimension_numbers<[1], [0], [0], [1], [0, 0, 1, 1], [], []>} : vector<8x128xf32>, vector<128x256xf32>, vector<8x256xf32> -> vector<8x256xf32>
    %c0_4 = arith.constant 0 : index
    %c0_5 = arith.constant 0 : index
    %c0_6 = arith.constant 0 : index
    %4 = vector.load %arg3[%c0_4, %c0_5, %c0_6] : memref<1x1x256xf32, #tpu.memory_space<vmem>>, vector<1x1x256xf32>
    %5 = vector.shape_cast %4 : vector<1x1x256xf32> to vector<1x256xf32>
    %6 = vector.broadcast %5 : vector<1x256xf32> to vector<8x256xf32>
    %7 = arith.addf %3, %6 : vector<8x256xf32>
    %cst_7 = arith.constant 0.000000e+00 : f32
    %8 = vector.broadcast %cst_7 : f32 to vector<8x256xf32>
    %9 = arith.maximumf %7, %8 : vector<8x256xf32>
    %c0_8 = arith.constant 0 : index
    %c0_9 = arith.constant 0 : index
    %c0_10 = arith.constant 0 : index
    %10 = vector.load %arg4[%c0_8, %c0_9, %c0_10] : memref<1x256x128xf32, #tpu.memory_space<vmem>>, vector<1x256x128xf32>
    %11 = vector.shape_cast %10 : vector<1x256x128xf32> to vector<256x128xf32>
    %cst_11 = arith.constant dense<0.000000e+00> : vector<8x128xf32>
    %12 = tpu.matmul %9, %11, %cst_11 {dimension_numbers = #tpu.dot_dimension_numbers<[1], [0], [0], [1], [0, 0, 1, 1], [], []>} : vector<8x256xf32>, vector<256x128xf32>, vector<8x128xf32> -> vector<8x128xf32>
    %c0_12 = arith.constant 0 : index
    %c0_13 = arith.constant 0 : index
    %c0_14 = arith.constant 0 : index
    %13 = vector.load %arg5[%c0_12, %c0_13, %c0_14] : memref<1x1x128xf32, #tpu.memory_space<vmem>>, vector<1x1x128xf32>
    %14 = vector.shape_cast %13 : vector<1x1x128xf32> to vector<1x128xf32>
    %15 = vector.broadcast %14 : vector<1x128xf32> to vector<8x128xf32>
    %16 = arith.addf %12, %15 : vector<8x128xf32>
    %cst_15 = arith.constant 0.000000e+00 : f32
    %17 = vector.broadcast %cst_15 : f32 to vector<8x128xf32>
    %18 = arith.maximumf %16, %17 : vector<8x128xf32>
    %19 = arith.addf %18, %0 : vector<8x128xf32>
    %c0_16 = arith.constant 0 : index
    %c0_17 = arith.constant 0 : index
    %20 = vector.load %arg6[%c0_16, %c0_17] : memref<8x128xf32, #tpu.memory_space<vmem>>, vector<8x128xf32>
    tpu.vector_store %arg6[%c0_16, %c0_17], %19 {strides = array<i32>} : memref<8x128xf32, #tpu.memory_space<vmem>>, vector<8x128xf32>,
    return
  }
  func.func @transform_0(%arg0: i32) -> (i32, i32) {
    %c0_i32 = arith.constant 0 : i32
    %c0_i32_0 = arith.constant 0 : i32
    return %arg0, %c0_i32 : i32, i32
  }
  func.func @transform_1(%arg0: i32) -> (i32, i32, i32) {
    %c0_i32 = arith.constant 0 : i32
    %c0_i32_0 = arith.constant 0 : i32
    %c0_i32_1 = arith.constant 0 : i32
    %c0_i32_2 = arith.constant 0 : i32
    return %c0_i32, %c0_i32_0, %c0_i32_1 : i32, i32, i32
  }
  func.func @transform_2(%arg0: i32) -> (i32, i32, i32) {
    %c0_i32 = arith.constant 0 : i32
    %c0_i32_0 = arith.constant 0 : i32
    %c0_i32_1 = arith.constant 0 : i32
    %c0_i32_2 = arith.constant 0 : i32
    return %c0_i32, %c0_i32_0, %c0_i32_1 : i32, i32, i32
  }
  func.func @transform_3(%arg0: i32) -> (i32, i32, i32) {
    %c0_i32 = arith.constant 0 : i32
    %c0_i32_0 = arith.constant 0 : i32
    %c0_i32_1 = arith.constant 0 : i32
    %c0_i32_2 = arith.constant 0 : i32
    return %c0_i32, %c0_i32_0, %c0_i32_1 : i32, i32, i32
  }
  func.func @transform_4(%arg0: i32) -> (i32, i32, i32) {
    %c0_i32 = arith.constant 0 : i32
    %c0_i32_0 = arith.constant 0 : i32
    %c0_i32_1 = arith.constant 0 : i32
    %c0_i32_2 = arith.constant 0 : i32
    return %c0_i32, %c0_i32_0, %c0_i32_1 : i32, i32, i32
  }
  func.func @transform_5(%arg0: i32) -> (i32, i32) {
    %c0_i32 = arith.constant 0 : i32
    %c0_i32_0 = arith.constant 0 : i32
    return %arg0, %c0_i32 : i32, i32
  }
}

</mosaic_0001>

<llo_original>
// kernel: tpu_custom_call.1
$region0: #{tpu_custom_call.1}
  #allocation0 [shape = 'u32[]', space=smem, size = 0x4, offset = 0x4, fixed_abs, tag = 'smem constant byte address 0x4 - core index']
  #allocation1 [shape = 'u32[144,128]{1,0:T(1,128)}', space=vmem, size = 0x12000, scoped, tag = 'internal scratch']
  %s0 = inlined_call_operand.hbm [shape: f32[8,128], index: 0, kind: input, shape index: {}]
  %s1 = inlined_call_operand.hbm [shape: f32[1,128,256], index: 1, kind: input, shape index: {}]
  %s2 = inlined_call_operand.vmem [shape: f32[1,1,256], index: 2, kind: input, shape index: {}]
  %s3 = inlined_call_operand.hbm [shape: f32[1,256,128], index: 3, kind: input, shape index: {}]
  %s4 = inlined_call_operand.vmem [shape: f32[1,1,128], index: 4, kind: input, shape index: {}]
  %s5 = inlined_call_operand.hbm [shape: f32[8,128], index: 5, kind: output, shape index: {}]
  %s6 = sld [smem:[#allocation0]]
  $region42: #{tpu_custom_call.1} parent=0
    _
  %s8 = ssub.s32 1, %s6
  %s9 = scalar_select 0, %s8, %s6
  $region1: #{tpu_custom_call.1} parent=0
    #allocation2 [shape = 'u8[4096]{0}', space=vmem, size = 0x1000, scoped, tag = 'input window, operand 0, single buffered']
    #allocation3 [shape = 's32[1]{0}', space=sflag, size = 0x4, scoped, tag = 'scoped memory for tpu_custom_call.1']
    #allocation4 [shape = 's32[1]{0}', space=sflag, size = 0x4, scoped, tag = 'scoped memory for tpu_custom_call.1']
    #allocation5 [shape = 'u8[131072]{0}', space=vmem, size = 0x20000, scoped, tag = 'input window, operand 1, single buffered']
    #allocation6 [shape = 's32[1]{0}', space=sflag, size = 0x4, scoped, tag = 'scoped memory for tpu_custom_call.1']
    #allocation7 [shape = 'u8[131072]{0}', space=vmem, size = 0x20000, scoped, tag = 'input window, operand 3, single buffered']
    #allocation8 [shape = 'u8[4096]{0}', space=vmem, size = 0x1000, scoped, tag = 'output window, operand 0, single buffered']
    %10 = vsyncpa [#allocation3], 0
    %11 = vsyncpa [#allocation6], 0
    %12 = vsyncpa [#allocation4], 0
    // Predicated region
    $region2: #{tpu_custom_call.1} parent=1 // pred_check
      _
    $region3: #{tpu_custom_call.1} parent=1 // pred_check_branch
      %14 = sbr.rel (0) target = $region5
    $region4: #{tpu_custom_call.1} parent=1 // pred_region
      %s16 = ssub.s32 128, 128
      %17 = vsyncadd [#allocation3], %s16
      %s19 = sshll.u32 [#allocation2], 4
      %s20 = int_to_ptr.vmem [resolvable:$true] %s19
      %22 = dma.hbm_to_vmem [thread:$0]  %s0, 128, %s20, [#allocation3]
    $region5: #{tpu_custom_call.1} parent=1 // pred_fallthru
      _
    // Predicated region
    $region6: #{tpu_custom_call.1} parent=1 // pred_check
      _
    $region7: #{tpu_custom_call.1} parent=1 // pred_check_branch
      %24 = sbr.rel (0) target = $region9
    $region8: #{tpu_custom_call.1} parent=1 // pred_region
      %s26 = ssub.s32 4096, 4096
      %27 = vsyncadd [#allocation6], %s26
      %s28 = sshll.u32 [#allocation5], 4
      %s29 = int_to_ptr.vmem [resolvable:$true] %s28
      %34 = dma.hbm_to_vmem [thread:$0]  %s1, 4096, %s29, [#allocation6], 256, 256, 16
    $region9: #{tpu_custom_call.1} parent=1 // pred_fallthru
      _
    // Predicated region
    $region10: #{tpu_custom_call.1} parent=1 // pred_check
      _
    $region11: #{tpu_custom_call.1} parent=1 // pred_check_branch
      %36 = sbr.rel (0) target = $region13
    $region12: #{tpu_custom_call.1} parent=1 // pred_region
      _
    $region13: #{tpu_custom_call.1} parent=1 // pred_fallthru
      _
    // Predicated region
    $region14: #{tpu_custom_call.1} parent=1 // pred_check
      _
    $region15: #{tpu_custom_call.1} parent=1 // pred_check_branch
      %38 = sbr.rel (0) target = $region17
    $region16: #{tpu_custom_call.1} parent=1 // pred_region
      %s40 = ssub.s32 4096, 4096
      %41 = vsyncadd [#allocation6], %s40
      %s42 = sshll.u32 [#allocation7], 4
      %s43 = int_to_ptr.vmem [resolvable:$true] %s42
      %48 = dma.hbm_to_vmem [thread:$0]  %s3, 4096, %s43, [#allocation6], 128, 128, 8
    $region17: #{tpu_custom_call.1} parent=1 // pred_fallthru
      _
    // Predicated region
    $region18: #{tpu_custom_call.1} parent=1 // pred_check
      _
    $region19: #{tpu_custom_call.1} parent=1 // pred_check_branch
      %50 = sbr.rel (0) target = $region21
    $region20: #{tpu_custom_call.1} parent=1 // pred_region
      _
    $region21: #{tpu_custom_call.1} parent=1 // pred_fallthru
      _
    // Predicated region
    $region22: #{tpu_custom_call.1} parent=1 // pred_check
      _
    $region23: #{tpu_custom_call.1} parent=1 // pred_check_branch
      %52 = sbr.rel (0) target = $region25
    $region24: #{tpu_custom_call.1} parent=1 // pred_region
      %53 = dma.done [#allocation3], 128
    $region25: #{tpu_custom_call.1} parent=1 // pred_fallthru
      _
    // Predicated region
    $region26: #{tpu_custom_call.1} parent=1 // pred_check
      _
    $region27: #{tpu_custom_call.1} parent=1 // pred_check_branch
      %55 = sbr.rel (0) target = $region29
    $region28: #{tpu_custom_call.1} parent=1 // pred_region
      %56 = dma.done [#allocation6], 4096
    $region29: #{tpu_custom_call.1} parent=1 // pred_fallthru
      _
    // Predicated region
    $region30: #{tpu_custom_call.1} parent=1 // pred_check
      _
    $region31: #{tpu_custom_call.1} parent=1 // pred_check_branch
      %58 = sbr.rel (0) target = $region33
    $region32: #{tpu_custom_call.1} parent=1 // pred_region
      %59 = dma.done [#allocation6], 4096
    $region33: #{tpu_custom_call.1} parent=1 // pred_fallthru
      _
    %v60 = vld [vmem:[#allocation2] sm:$0xff]
    %v61 = vld [vmem:[#allocation5] sm:$0xff]
    %v62 = vld [vmem:[#allocation5 + $0x8] sm:$0xff]
    %v63 = vld [vmem:[#allocation5 + $0x10] sm:$0xff]
    %v64 = vld [vmem:[#allocation5 + $0x18] sm:$0xff]
    %v65 = vld [vmem:[#allocation5 + $0x20] sm:$0xff]
    %v66 = vld [vmem:[#allocation5 + $0x28] sm:$0xff]
    %v67 = vld [vmem:[#allocation5 + $0x30] sm:$0xff]
    %v68 = vld [vmem:[#allocation5 + $0x38] sm:$0xff]
    %v69 = vld [vmem:[#allocation5 + $0x40] sm:$0xff]
    %v70 = vld [vmem:[#allocation5 + $0x48] sm:$0xff]
    %v71 = vld [vmem:[#allocation5 + $0x50] sm:$0xff]
    %v72 = vld [vmem:[#allocation5 + $0x58] sm:$0xff]
    %v73 = vld [vmem:[#allocation5 + $0x60] sm:$0xff]
    %v74 = vld [vmem:[#allocation5 + $0x68] sm:$0xff]
    %v75 = vld [vmem:[#allocation5 + $0x70] sm:$0xff]
    %v76 = vld [vmem:[#allocation5 + $0x78] sm:$0xff]
    %v77 = vld [vmem:[#allocation5 + $0x80] sm:$0xff]
    %v78 = vld [vmem:[#allocation5 + $0x88] sm:$0xff]
    %v79 = vld [vmem:[#allocation5 + $0x90] sm:$0xff]
    %v80 = vld [vmem:[#allocation5 + $0x98] sm:$0xff]
    %v81 = vld [vmem:[#allocation5 + $0xa0] sm:$0xff]
    %v82 = vld [vmem:[#allocation5 + $0xa8] sm:$0xff]
    %v83 = vld [vmem:[#allocation5 + $0xb0] sm:$0xff]
    %v84 = vld [vmem:[#allocation5 + $0xb8] sm:$0xff]
    %v85 = vld [vmem:[#allocation5 + $0xc0] sm:$0xff]
    %v86 = vld [vmem:[#allocation5 + $0xc8] sm:$0xff]
    %v87 = vld [vmem:[#allocation5 + $0xd0] sm:$0xff]
    %v88 = vld [vmem:[#allocation5 + $0xd8] sm:$0xff]
    %v89 = vld [vmem:[#allocation5 + $0xe0] sm:$0xff]
    %v90 = vld [vmem:[#allocation5 + $0xe8] sm:$0xff]
    %v91 = vld [vmem:[#allocation5 + $0xf0] sm:$0xff]
    %v92 = vld [vmem:[#allocation5 + $0xf8] sm:$0xff]
    %v93 = vld [vmem:[%s2] sm:$0x3]
    %v95 = vlaneseq
    %v96 = vshrl.u32 %v95, 7
    %v97 = vsub.s32 0, %v96
    %v98 = vrot.slane %v93, %v97
    %v99 = vlaneseq
    %v100 = vshrl.u32 %v99, 7
    %v101 = vsub.s32 1, %v100
    %v102 = vrot.slane %v93, %v101
    %105 = vmatprep.subr.mxu0 %v62
    %106 = vmatpush1.msra.mxu0 %v61
    %107 = vmatprep.subr.mxu0 %v64
    %108 = vmatpush1.msra.mxu0 %v63
    %109 = vmatprep.subr.mxu0 %v66
    %110 = vmatpush1.msra.mxu0 %v65
    %111 = vmatprep.subr.mxu0 %v68
    %112 = vmatpush1.msra.mxu0 %v67
    %113 = vmatprep.subr.mxu0 %v70
    %114 = vmatpush1.msra.mxu0 %v69
    %115 = vmatprep.subr.mxu0 %v72
    %116 = vmatpush1.msra.mxu0 %v71
    %117 = vmatprep.subr.mxu0 %v74
    %118 = vmatpush1.msra.mxu0 %v73
    %119 = vmatprep.subr.mxu0 %v76
    %120 = vmatpush1.msra.mxu0 %v75
    %121 = vmatprep.subr.mxu0 %v78
    %122 = vmatpush1.msra.mxu0 %v77
    %123 = vmatprep.subr.mxu0 %v80
    %124 = vmatpush1.msra.mxu0 %v79
    %125 = vmatprep.subr.mxu0 %v82
    %126 = vmatpush1.msra.mxu0 %v81
    %127 = vmatprep.subr.mxu0 %v84
    %128 = vmatpush1.msra.mxu0 %v83
    %129 = vmatprep.subr.mxu0 %v86
    %130 = vmatpush1.msra.mxu0 %v85
    %131 = vmatprep.subr.mxu0 %v88
    %132 = vmatpush1.msra.mxu0 %v87
    %133 = vmatprep.subr.mxu0 %v90
    %134 = vmatpush1.msra.mxu0 %v89
    %135 = vmatprep.subr.mxu0 %v92
    %136 = vmatpush1.msra.mxu0 %v91
    %137 = vmatprep.subr.mxu0 0.0
    %138 = vmatpush1.msra.mxu0 0.0
    %139 = vmatprep.subr.mxu0 0.0
    %140 = vmatpush1.msra.mxu0 0.0
    %141 = vmatprep.subr.mxu0 0.0
    %142 = vmatpush1.msra.mxu0 0.0
    %143 = vmatprep.subr.mxu0 0.0
    %144 = vmatpush1.msra.mxu0 0.0
    %145 = vmatprep.subr.mxu0 0.0
    %146 = vmatpush1.msra.mxu0 0.0
    %147 = vmatprep.subr.mxu0 0.0
    %148 = vmatpush1.msra.mxu0 0.0
    %149 = vmatprep.subr.mxu0 0.0
    %150 = vmatpush1.msra.mxu0 0.0
    %151 = vmatprep.subr.mxu0 0.0
    %152 = vmatpush1.msra.mxu0 0.0
    %153 = vmatprep.subr.mxu0 0.0
    %154 = vmatpush1.msra.mxu0 0.0
    %155 = vmatprep.subr.mxu0 0.0
    %156 = vmatpush1.msra.mxu0 0.0
    %157 = vmatprep.subr.mxu0 0.0
    %158 = vmatpush1.msra.mxu0 0.0
    %159 = vmatprep.subr.mxu0 0.0
    %160 = vmatpush1.msra.mxu0 0.0
    %161 = vmatprep.subr.mxu0 0.0
    %162 = vmatpush1.msra.mxu0 0.0
    %163 = vmatprep.subr.mxu0 0.0
    %164 = vmatpush1.msra.mxu0 0.0
    %165 = vmatprep.subr.mxu0 0.0
    %166 = vmatpush1.msra.mxu0 0.0
    %167 = vmatprep.subr.mxu0 0.0
    %168 = vmatpush1.msra.mxu0 0.0
    %169 = vmatprep.mubr.f32.mxu0 0.0
    %170 = vmatmul.mubr.f32.gmra.mrb[0].mxu0 %v60
    %v171 = vpop.f32.mrb[0].mxu0
    %v172 = vadd.f32 %v98, %v171
    %v173 = vpop.f32.mrb[0].mxu0
    %v174 = vadd.f32 %v102, %v173
    %175 = vdwg.mxu0
    %v176 = vmax.f32 %v172, 0.0
    %v177 = vmax.f32 %v174, 0.0
    %v178 = vld [vmem:[#allocation7] sm:$0xff]
    %v179 = vld [vmem:[#allocation7 + $0x8] sm:$0xff]
    %v180 = vld [vmem:[#allocation7 + $0x10] sm:$0xff]
    %v181 = vld [vmem:[#allocation7 + $0x18] sm:$0xff]
    %v182 = vld [vmem:[#allocation7 + $0x20] sm:$0xff]
    %v183 = vld [vmem:[#allocation7 + $0x28] sm:$0xff]
    %v184 = vld [vmem:[#allocation7 + $0x30] sm:$0xff]
    %v185 = vld [vmem:[#allocation7 + $0x38] sm:$0xff]
    %v186 = vld [vmem:[#allocation7 + $0x40] sm:$0xff]
    %v187 = vld [vmem:[#allocation7 + $0x48] sm:$0xff]
    %v188 = vld [vmem:[#allocation7 + $0x50] sm:$0xff]
    %v189 = vld [vmem:[#allocation7 + $0x58] sm:$0xff]
    %v190 = vld [vmem:[#allocation7 + $0x60] sm:$0xff]
    %v191 = vld [vmem:[#allocation7 + $0x68] sm:$0xff]
    %v192 = vld [vmem:[#allocation7 + $0x70] sm:$0xff]
    %v193 = vld [vmem:[#allocation7 + $0x78] sm:$0xff]
    %v194 = vld [vmem:[#allocation7 + $0x80] sm:$0xff]
    %v195 = vld [vmem:[#allocation7 + $0x88] sm:$0xff]
    %v196 = vld [vmem:[#allocation7 + $0x90] sm:$0xff]
    %v197 = vld [vmem:[#allocation7 + $0x98] sm:$0xff]
    %v198 = vld [vmem:[#allocation7 + $0xa0] sm:$0xff]
    %v199 = vld [vmem:[#allocation7 + $0xa8] sm:$0xff]
    %v200 = vld [vmem:[#allocation7 + $0xb0] sm:$0xff]
    %v201 = vld [vmem:[#allocation7 + $0xb8] sm:$0xff]
    %v202 = vld [vmem:[#allocation7 + $0xc0] sm:$0xff]
    %v203 = vld [vmem:[#allocation7 + $0xc8] sm:$0xff]
    %v204 = vld [vmem:[#allocation7 + $0xd0] sm:$0xff]
    %v205 = vld [vmem:[#allocation7 + $0xd8] sm:$0xff]
    %v206 = vld [vmem:[#allocation7 + $0xe0] sm:$0xff]
    %v207 = vld [vmem:[#allocation7 + $0xe8] sm:$0xff]
    %v208 = vld [vmem:[#allocation7 + $0xf0] sm:$0xff]
    %v209 = vld [vmem:[#allocation7 + $0xf8] sm:$0xff]
    %v210 = vld [vmem:[%s4] sm:$0x1]
    %v212 = vlaneseq
    %v213 = vshrl.u32 %v212, 7
    %v214 = vsub.s32 0, %v213
    %v215 = vrot.slane %v210, %v214
    %217 = vmatprep.subr.mxu0 0.0
    %218 = vmatpush1.msra.mxu0 %v178
    %219 = vmatprep.subr.mxu0 0.0
    %220 = vmatpush1.msra.mxu0 %v179
    %221 = vmatprep.subr.mxu0 0.0
    %222 = vmatpush1.msra.mxu0 %v180
    %223 = vmatprep.subr.mxu0 0.0
    %224 = vmatpush1.msra.mxu0 %v181
    %225 = vmatprep.subr.mxu0 0.0
    %226 = vmatpush1.msra.mxu0 %v182
    %227 = vmatprep.subr.mxu0 0.0
    %228 = vmatpush1.msra.mxu0 %v183
    %229 = vmatprep.subr.mxu0 0.0
    %230 = vmatpush1.msra.mxu0 %v184
    %231 = vmatprep.subr.mxu0 0.0
    %232 = vmatpush1.msra.mxu0 %v185
    %233 = vmatprep.subr.mxu0 0.0
    %234 = vmatpush1.msra.mxu0 %v186
    %235 = vmatprep.subr.mxu0 0.0
    %236 = vmatpush1.msra.mxu0 %v187
    %237 = vmatprep.subr.mxu0 0.0
    %238 = vmatpush1.msra.mxu0 %v188
    %239 = vmatprep.subr.mxu0 0.0
    %240 = vmatpush1.msra.mxu0 %v189
    %241 = vmatprep.subr.mxu0 0.0
    %242 = vmatpush1.msra.mxu0 %v190
    %243 = vmatprep.subr.mxu0 0.0
    %244 = vmatpush1.msra.mxu0 %v191
    %245 = vmatprep.subr.mxu0 0.0
    %246 = vmatpush1.msra.mxu0 %v192
    %247 = vmatprep.subr.mxu0 0.0
    %248 = vmatpush1.msra.mxu0 %v193
    %249 = vmatprep.subr.mxu0 0.0
    %250 = vmatpush1.msra.mxu0 %v194
    %251 = vmatprep.subr.mxu0 0.0
    %252 = vmatpush1.msra.mxu0 %v195
    %253 = vmatprep.subr.mxu0 0.0
    %254 = vmatpush1.msra.mxu0 %v196
    %255 = vmatprep.subr.mxu0 0.0
    %256 = vmatpush1.msra.mxu0 %v197
    %257 = vmatprep.subr.mxu0 0.0
    %258 = vmatpush1.msra.mxu0 %v198
    %259 = vmatprep.subr.mxu0 0.0
    %260 = vmatpush1.msra.mxu0 %v199
    %261 = vmatprep.subr.mxu0 0.0
    %262 = vmatpush1.msra.mxu0 %v200
    %263 = vmatprep.subr.mxu0 0.0
    %264 = vmatpush1.msra.mxu0 %v201
    %265 = vmatprep.subr.mxu0 0.0
    %266 = vmatpush1.msra.mxu0 %v202
    %267 = vmatprep.subr.mxu0 0.0
    %268 = vmatpush1.msra.mxu0 %v203
    %269 = vmatprep.subr.mxu0 0.0
    %270 = vmatpush1.msra.mxu0 %v204
    %271 = vmatprep.subr.mxu0 0.0
    %272 = vmatpush1.msra.mxu0 %v205
    %273 = vmatprep.subr.mxu0 0.0
    %274 = vmatpush1.msra.mxu0 %v206
    %275 = vmatprep.subr.mxu0 0.0
    %276 = vmatpush1.msra.mxu0 %v207
    %277 = vmatprep.subr.mxu0 0.0
    %278 = vmatpush1.msra.mxu0 %v208
    %279 = vmatprep.subr.mxu0 0.0
    %280 = vmatpush1.msra.mxu0 %v209
    %281 = vmatprep.mubr.f32.mxu0 %v177
    %282 = vmatmul.mubr.f32.gmra.mrb[0].mxu0 %v176
    %v283 = vpop.f32.mrb[0].mxu0
    %v284 = vadd.f32 %v215, %v283
    %v285 = vpop.f32.mrb[0].mxu0
    %286 = vdwg.mxu0
    %v287 = vmax.f32 %v284, 0.0
    %v288 = vadd.f32 %v287, %v60
    %289 = vst [vmem:[#allocation8] sm:$0xff] %v288
    // Predicated region
    $region34: #{tpu_custom_call.1} parent=1 // pred_check
      _
    $region35: #{tpu_custom_call.1} parent=1 // pred_check_branch
      %291 = sbr.rel (0) target = $region37
    $region36: #{tpu_custom_call.1} parent=1 // pred_region
      %s293 = ssub.s32 128, 128
      %294 = vsyncadd [#allocation4], %s293
      %s296 = sshll.u32 [#allocation8], 4
      %s297 = int_to_ptr.vmem [resolvable:$true] %s296
      %299 = dma.vmem_to_hbm [thread:$0]  %s297, 128, %s5, [#allocation4]
    $region37: #{tpu_custom_call.1} parent=1 // pred_fallthru
      _
    // Predicated region
    $region38: #{tpu_custom_call.1} parent=1 // pred_check
      _
    $region39: #{tpu_custom_call.1} parent=1 // pred_check_branch
      %301 = sbr.rel (0) target = $region41
    $region40: #{tpu_custom_call.1} parent=1 // pred_region
      %302 = dma.done [#allocation4], 128
    $region41: #{tpu_custom_call.1} parent=1 // pred_fallthru
      _
    %303 = vsyncpa [#allocation3], 1
    %304 = vsyncpa [#allocation6], 1
    %305 = vsyncpa [#allocation4], 1

</llo_original>
